<compile_context>
chip_gen: v5e
topology: v5e:2x2
jax: 0.10.0
libtpu: 0.0.40
codegen_flags: <defaults>
</compile_context>

<pallas_src>
import jax
import jax.numpy as jnp
from jax.experimental import pallas as pl
from jax.experimental.pallas import tpu as pltpu


# ---------------------------------------------------------------------------
# Device detection (v7x has 2 TensorCores per chip -> split the style matmul)
# ---------------------------------------------------------------------------
def _detect_v7x():
    try:
        kind = jax.devices()[0].device_kind.lower()
    except Exception:
        return False
    return ("v7" in kind) or ("tpu7" in kind)


_USE_DUAL_CORE = _detect_v7x()


# ---------------------------------------------------------------------------
# Kernels
# ---------------------------------------------------------------------------
def _fused_slab_kernel(t_ref, w1_ref, b1_ref, w2_ref, b2_ref,
                       c_ref, ws_ref, bs_ref, out_ref):
    """Gridless fused kernel: time MLP + style Linear, one lane-dense output slab.

    out_ref[:, :toc]  = Linear2(SiLU(Linear1(time_emb)))
    out_ref[:, toc:]  = Linear_style(cond)
    """
    # ---- time branch (MXU in bf16, accumulate + elementwise in f32) ----
    t = t_ref[...].astype(jnp.bfloat16)
    h = jnp.dot(t, w1_ref[...], preferred_element_type=jnp.float32) + b1_ref[...]
    h = h * jax.nn.sigmoid(h)                       # SiLU in f32 (EUP)
    t_out = jnp.dot(h.astype(jnp.bfloat16), w2_ref[...],
                    preferred_element_type=jnp.float32) + b2_ref[...]

    # ---- style branch ----
    c = c_ref[...].astype(jnp.bfloat16)
    s_out = jnp.dot(c, ws_ref[...], preferred_element_type=jnp.float32) + bs_ref[...]

    # One unmasked lane-dense store (toc and sd are 128-multiples here).
    out_ref[...] = jnp.concatenate([t_out, s_out], axis=-1).astype(out_ref.dtype)


def _fused_two_out_kernel(t_ref, w1_ref, b1_ref, w2_ref, b2_ref,
                          c_ref, ws_ref, bs_ref, t_out_ref, s_out_ref):
    """Fallback fused kernel with separate outputs (toc not a 128-multiple)."""
    t = t_ref[...].astype(jnp.bfloat16)
    h = jnp.dot(t, w1_ref[...], preferred_element_type=jnp.float32) + b1_ref[...]
    h = h * jax.nn.sigmoid(h)
    t_out = jnp.dot(h.astype(jnp.bfloat16), w2_ref[...],
                    preferred_element_type=jnp.float32) + b2_ref[...]
    t_out_ref[...] = t_out.astype(t_out_ref.dtype)

    c = c_ref[...].astype(jnp.bfloat16)
    s = jnp.dot(c, ws_ref[...], preferred_element_type=jnp.float32) + bs_ref[...]
    s_out_ref[...] = s.astype(s_out_ref.dtype)


def _fused_dualcore_kernel(t_ref, w1_ref, b1_ref, w2_ref, b2_ref,
                           c_ref, ws_ref, bs_ref, t_out_ref, s_out_ref):
    """v7x path: each grid point (-> each TensorCore) computes the tiny time
    branch redundantly and ONE column-half of the style matmul.  Every output
    block is written exactly once (t_out is duplicated along a leading axis of
    size 2; the wrapper keeps slot 0)."""
    # ---- time branch (tiny, recomputed on both cores) ----
    t = t_ref[...].astype(jnp.bfloat16)
    h = jnp.dot(t, w1_ref[...], preferred_element_type=jnp.float32) + b1_ref[...]
    h = h * jax.nn.sigmoid(h)
    t_out = jnp.dot(h.astype(jnp.bfloat16), w2_ref[...],
                    preferred_element_type=jnp.float32) + b2_ref[...]
    t_out_ref[0] = t_out.astype(t_out_ref.dtype)

    # ---- this core's half of the style columns ----
    c = c_ref[...].astype(jnp.bfloat16)
    s = jnp.dot(c, ws_ref[...], preferred_element_type=jnp.float32) + bs_ref[...]
    s_out_ref[...] = s.astype(s_out_ref.dtype)


def _style_only_kernel(c_ref, ws_ref, bs_ref, s_out_ref):
    """style = cond @ W + b  (used when time_emb is None)."""
    c = c_ref[...].astype(jnp.bfloat16)
    s = jnp.dot(c, ws_ref[...], preferred_element_type=jnp.float32)
    s_out_ref[...] = (s + bs_ref[...]).astype(s_out_ref.dtype)


# ---------------------------------------------------------------------------
# Wrappers
# ---------------------------------------------------------------------------
def _vmem_spec():
    # Small shapes: whole array as one block resident in VMEM.
    return pl.BlockSpec(memory_space=pltpu.MemorySpace.VMEM)


def _nbytes(*arrs):
    return int(sum(a.size * a.dtype.itemsize for a in arrs))


@jax.jit
def _fused_forward(time_emb, cond, w1, b1, w2, b2, ws, bs):
    B = time_emb.shape[0]
    tc, toc = w1.shape
    sd = ws.shape[1]

    flops = 2 * B * tc * toc + 2 * B * toc * toc + 2 * B * cond.shape[1] * sd
    out_bytes = B * toc * 4 + B * sd * 4
    cost = pl.CostEstimate(
        flops=flops,
        transcendentals=B * toc,  # sigmoid in SiLU
        bytes_accessed=_nbytes(time_emb, cond, w1, b1, w2, b2, ws, bs) + out_bytes,
    )

    # ---- v7x: split the dominant style matmul across the two TensorCores ----
    if _USE_DUAL_CORE and sd % 256 == 0 and toc % 128 == 0:
        half = sd // 2
        t_dup, s_out = pl.pallas_call(
            _fused_dualcore_kernel,
            grid=(2,),
            out_shape=(jax.ShapeDtypeStruct((2, B, toc), jnp.float32),
                       jax.ShapeDtypeStruct((B, sd), jnp.float32)),
            in_specs=[
                pl.BlockSpec((B, tc), lambda i: (0, 0)),      # time_emb
                pl.BlockSpec((tc, toc), lambda i: (0, 0)),     # w1
                pl.BlockSpec((1, toc), lambda i: (0, 0)),      # b1
                pl.BlockSpec((toc, toc), lambda i: (0, 0)),    # w2
                pl.BlockSpec((1, toc), lambda i: (0, 0)),      # b2
                pl.BlockSpec((B, sd), lambda i: (0, 0)),       # cond
                pl.BlockSpec((sd, half), lambda i: (0, i)),    # ws column half
                pl.BlockSpec((1, half), lambda i: (0, i)),     # bs column half
            ],
            out_specs=(
                pl.BlockSpec((1, B, toc), lambda i: (i, 0, 0)),
                pl.BlockSpec((B, half), lambda i: (0, i)),
            ),
            compiler_params=pltpu.CompilerParams(
                dimension_semantics=("parallel",)),
            cost_estimate=cost,
        )(time_emb, w1, b1, w2, b2, cond, ws, bs)
        return t_dup[0], s_out

    # ---- v5e / v6e: gridless, single VMEM-resident block ----
    if toc % 128 == 0 and sd % 128 == 0:
        slab = pl.pallas_call(
            _fused_slab_kernel,
            out_shape=jax.ShapeDtypeStruct((B, toc + sd), jnp.float32),
            in_specs=[_vmem_spec()] * 8,
            out_specs=_vmem_spec(),
            cost_estimate=cost,
        )(time_emb, w1, b1, w2, b2, cond, ws, bs)
        return slab[:, :toc], slab[:, toc:]

    t_out, s_out = pl.pallas_call(
        _fused_two_out_kernel,
        out_shape=(jax.ShapeDtypeStruct((B, toc), jnp.float32),
                   jax.ShapeDtypeStruct((B, sd), jnp.float32)),
        in_specs=[_vmem_spec()] * 8,
        out_specs=(_vmem_spec(), _vmem_spec()),
        cost_estimate=cost,
    )(time_emb, w1, b1, w2, b2, cond, ws, bs)
    return t_out, s_out


@jax.jit
def _style_forward(cond, ws, bs):
    B = cond.shape[0]
    sd = ws.shape[1]
    cost = pl.CostEstimate(
        flops=2 * B * cond.shape[1] * sd,
        transcendentals=0,
        bytes_accessed=_nbytes(cond, ws, bs) + B * sd * 4,
    )
    return pl.pallas_call(
        _style_only_kernel,
        out_shape=jax.ShapeDtypeStruct((B, sd), jnp.float32),
        in_specs=[_vmem_spec()] * 3,
        out_specs=_vmem_spec(),
        cost_estimate=cost,
    )(cond, ws, bs)


def time_style_separate_embed(params, time_emb=None, cond=None):
    """Mirrors TimeStyleSeperateEmbed.forward (is_ortho=False path).

    Returns dict with keys emb, time_emb, style (EmbedReturn equivalent).
    """
    # `cond` may be a dict with key 'cond' (the try/except in the PyTorch forward)
    if isinstance(cond, dict):
        cond = cond["cond"]

    if time_emb is None:
        style = _style_forward(cond, params["ws"], params["bs"])
        return {"emb": style, "time_emb": None, "style": style}

    t_out, style = _fused_forward(
        time_emb, cond,
        params["w1"], params["b1"], params["w2"], params["b2"],
        params["ws"], params["bs"])
    return {"emb": style, "time_emb": t_out, "style": style}


# ---------------------------------------------------------------------------
# Deterministic parameter init (synthetic; shapes from __init__)
#   - weights stored as (in, out) in bfloat16 (MXU-native)
#   - biases stored as (1, out) in float32 (VPU adds stay f32)
# NOTE: bf16 weights are a small numerical deviation from the f32 PyTorch
#       checkpoint; fine for inference, validate against real weights.
# ---------------------------------------------------------------------------
def init_params(key, time_channels, time_out_channels, style_dim=512):
    ks = jax.random.split(key, 6)
    s1 = 1.0 / jnp.sqrt(time_channels)
    s2 = 1.0 / jnp.sqrt(time_out_channels)
    ss = 1.0 / jnp.sqrt(style_dim)
    return {
        "w1": jax.random.uniform(ks[0], (time_channels, time_out_channels),
                                 jnp.float32, -s1, s1).astype(jnp.bfloat16),
        "b1": jax.random.uniform(ks[1], (1, time_out_channels),
                                 jnp.float32, -s1, s1),
        "w2": jax.random.uniform(ks[2], (time_out_channels, time_out_channels),
                                 jnp.float32, -s2, s2).astype(jnp.bfloat16),
        "b2": jax.random.uniform(ks[3], (1, time_out_channels),
                                 jnp.float32, -s2, s2),
        "ws": jax.random.uniform(ks[4], (style_dim, style_dim),
                                 jnp.float32, -ss, ss).astype(jnp.bfloat16),
        "bs": jax.random.uniform(ks[5], (1, style_dim),
                                 jnp.float32, -ss, ss),
    }


# ---------------------------------------------------------------------------
# Reference (plain JAX, same bf16-MXU / f32-accumulate recipe)
# ---------------------------------------------------------------------------
def _ref_forward(params, time_emb, cond):
    h = jnp.dot(time_emb.astype(jnp.bfloat16), params["w1"],
                preferred_element_type=jnp.float32) + params["b1"]
    h = h * jax.nn.sigmoid(h)
    t = jnp.dot(h.astype(jnp.bfloat16), params["w2"],
                preferred_element_type=jnp.float32) + params["b2"]
    s = jnp.dot(cond.astype(jnp.bfloat16), params["ws"],
                preferred_element_type=jnp.float32) + params["bs"]
    return t, s


if __name__ == "__main__":
    key = jax.random.PRNGKey(0)
    # B=8 (f32 sublane tile) amortizes the fixed launch + weight-DMA cost and
    # makes the output stores unmasked on the sublane axis (perf review item).
    B = 8
    time_channels = 64
    time_out_channels = 128   # multiple of 128 -> lane-dense merged output slab
    style_dim = 512

    pkey, tkey, ckey = jax.random.split(key, 3)
    params = init_params(pkey, time_channels, time_out_channels, style_dim)

    time_emb = jax.random.normal(tkey, (B, time_channels), jnp.float32)
    cond = jax.random.normal(ckey, (B, style_dim), jnp.float32)

    # Main fused path.
    out = time_style_separate_embed(params, time_emb=time_emb, cond=cond)
    jax.block_until_ready(out["style"])
    jax.block_until_ready(out["time_emb"])

    t_ref, s_ref = _ref_forward(params, time_emb, cond)
    assert out["time_emb"].shape == (B, time_out_channels)
    assert out["style"].shape == (B, style_dim)
    assert jnp.allclose(out["time_emb"], t_ref, atol=1e-2, rtol=1e-2)
    assert jnp.allclose(out["style"], s_ref, atol=1e-2, rtol=1e-2)
    assert out["emb"] is out["style"]

    # time_emb=None path (style-only kernel) + cond passed as a dict.
    out2 = time_style_separate_embed(params, time_emb=None, cond={"cond": cond})
    jax.block_until_ready(out2["style"])
    assert out2["time_emb"] is None
    assert jnp.allclose(out2["style"], s_ref, atol=1e-2, rtol=1e-2)

    print("KERNEL_OK")
</pallas_src>

<mosaic_0001>
module attributes {stable_mosaic.version = 11 : i64} {
  func.func @_fused_slab_kernel(%arg0: memref<8x64xf32, #tpu.memory_space<vmem>>, %arg1: memref<64x128xbf16, #tpu.memory_space<vmem>>, %arg2: memref<1x128xf32, #tpu.memory_space<vmem>>, %arg3: memref<128x128xbf16, #tpu.memory_space<vmem>>, %arg4: memref<1x128xf32, #tpu.memory_space<vmem>>, %arg5: memref<8x512xf32, #tpu.memory_space<vmem>>, %arg6: memref<512x512xbf16, #tpu.memory_space<vmem>>, %arg7: memref<1x512xf32, #tpu.memory_space<vmem>>, %arg8: memref<8x640xf32, #tpu.memory_space<vmem>>) attributes {dimension_semantics = [], scalar_prefetch = 0 : i64, scratch_operands = 0 : i64, tpu.core_type = #tpu.core_type<tc>} {
    %c0 = arith.constant 0 : index
    %c0_0 = arith.constant 0 : index
    %0 = vector.load %arg0[%c0, %c0_0] : memref<8x64xf32, #tpu.memory_space<vmem>>, vector<8x64xf32>
    %1 = arith.truncf %0 : vector<8x64xf32> to vector<8x64xbf16>
    %c0_1 = arith.constant 0 : index
    %c0_2 = arith.constant 0 : index
    %2 = vector.load %arg1[%c0_1, %c0_2] : memref<64x128xbf16, #tpu.memory_space<vmem>>, vector<64x128xbf16>
    %cst = arith.constant dense<0.000000e+00> : vector<8x128xf32>
    %3 = tpu.matmul %1, %2, %cst {dimension_numbers = #tpu.dot_dimension_numbers<[1], [0], [0], [1], [0, 0, 1, 1], [], []>} : vector<8x64xbf16>, vector<64x128xbf16>, vector<8x128xf32> -> vector<8x128xf32>
    %c0_3 = arith.constant 0 : index
    %c0_4 = arith.constant 0 : index
    %4 = vector.load %arg2[%c0_3, %c0_4] : memref<1x128xf32, #tpu.memory_space<vmem>>, vector<1x128xf32>
    %5 = vector.broadcast %4 : vector<1x128xf32> to vector<8x128xf32>
    %6 = arith.addf %3, %5 : vector<8x128xf32>
    %7 = arith.negf %6 : vector<8x128xf32>
    %8 = math.exp %7 : vector<8x128xf32>
    %cst_5 = arith.constant 1.000000e+00 : f32
    %9 = vector.broadcast %cst_5 : f32 to vector<8x128xf32>
    %10 = arith.addf %9, %8 : vector<8x128xf32>
    %11 = arith.divf %9, %10 : vector<8x128xf32>
    %12 = arith.mulf %6, %11 : vector<8x128xf32>
    %13 = arith.truncf %12 : vector<8x128xf32> to vector<8x128xbf16>
    %c0_6 = arith.constant 0 : index
    %c0_7 = arith.constant 0 : index
    %14 = vector.load %arg3[%c0_6, %c0_7] : memref<128x128xbf16, #tpu.memory_space<vmem>>, vector<128x128xbf16>
    %cst_8 = arith.constant dense<0.000000e+00> : vector<8x128xf32>
    %15 = tpu.matmul %13, %14, %cst_8 {dimension_numbers = #tpu.dot_dimension_numbers<[1], [0], [0], [1], [0, 0, 1, 1], [], []>} : vector<8x128xbf16>, vector<128x128xbf16>, vector<8x128xf32> -> vector<8x128xf32>
    %c0_9 = arith.constant 0 : index
    %c0_10 = arith.constant 0 : index
    %16 = vector.load %arg4[%c0_9, %c0_10] : memref<1x128xf32, #tpu.memory_space<vmem>>, vector<1x128xf32>
    %17 = vector.broadcast %16 : vector<1x128xf32> to vector<8x128xf32>
    %18 = arith.addf %15, %17 : vector<8x128xf32>
    %c0_11 = arith.constant 0 : index
    %c0_12 = arith.constant 0 : index
    %19 = vector.load %arg5[%c0_11, %c0_12] : memref<8x512xf32, #tpu.memory_space<vmem>>, vector<8x512xf32>
    %20 = arith.truncf %19 : vector<8x512xf32> to vector<8x512xbf16>
    %c0_13 = arith.constant 0 : index
    %c0_14 = arith.constant 0 : index
    %21 = vector.load %arg6[%c0_13, %c0_14] : memref<512x512xbf16, #tpu.memory_space<vmem>>, vector<512x512xbf16>
    %cst_15 = arith.constant dense<0.000000e+00> : vector<8x512xf32>
    %22 = tpu.matmul %20, %21, %cst_15 {dimension_numbers = #tpu.dot_dimension_numbers<[1], [0], [0], [1], [0, 0, 1, 1], [], []>} : vector<8x512xbf16>, vector<512x512xbf16>, vector<8x512xf32> -> vector<8x512xf32>
    %c0_16 = arith.constant 0 : index
    %c0_17 = arith.constant 0 : index
    %23 = vector.load %arg7[%c0_16, %c0_17] : memref<1x512xf32, #tpu.memory_space<vmem>>, vector<1x512xf32>
    %24 = vector.broadcast %23 : vector<1x512xf32> to vector<8x512xf32>
    %25 = arith.addf %22, %24 : vector<8x512xf32>
    %26 = tpu.concatenate %18, %25 in 1 : vector<8x128xf32>, vector<8x512xf32> -> vector<8x640xf32>
    %c0_18 = arith.constant 0 : index
    %c0_19 = arith.constant 0 : index
    %27 = vector.load %arg8[%c0_18, %c0_19] : memref<8x640xf32, #tpu.memory_space<vmem>>, vector<8x640xf32>
    tpu.vector_store %arg8[%c0_18, %c0_19], %26 {strides = array<i32>} : memref<8x640xf32, #tpu.memory_space<vmem>>, vector<8x640xf32>,
    return
  }
}

</mosaic_0001>

<llo_original>
// kernel: _fused_forward.1
$region0: #{_fused_forward.1}
  #allocation0 [shape = 'u32[]', space=smem, size = 0x4, offset = 0x4, fixed_abs, tag = 'smem constant byte address 0x4 - core index']
  #allocation1 [shape = 'u32[72,128]{1,0:T(1,128)}', space=vmem, size = 0x9000, scoped, tag = 'internal scratch']
  %s0 = inlined_call_operand.hbm [shape: f32[8,64], index: 0, kind: input, shape index: {}]
  %s1 = inlined_call_operand.hbm [shape: bf16[64,128], index: 1, kind: input, shape index: {}]
  %s2 = inlined_call_operand.vmem [shape: f32[1,128], index: 2, kind: input, shape index: {}]
  %s3 = inlined_call_operand.hbm [shape: bf16[128,128], index: 3, kind: input, shape index: {}]
  %s4 = inlined_call_operand.vmem [shape: f32[1,128], index: 4, kind: input, shape index: {}]
  %s5 = inlined_call_operand.hbm [shape: f32[8,512], index: 5, kind: input, shape index: {}]
  %s6 = inlined_call_operand.hbm [shape: bf16[512,512], index: 6, kind: input, shape index: {}]
  %s7 = inlined_call_operand.vmem [shape: f32[1,512], index: 7, kind: input, shape index: {}]
  %s8 = inlined_call_operand.vmem [shape: f32[8,640], index: 8, kind: output, shape index: {}]
  %s9 = sld [smem:[#allocation0]]
  $region62: #{_fused_forward.1} parent=0
    _
  %s11 = ssub.s32 1, %s9
  %s12 = scalar_select 0, %s11, %s9
  $region1: #{_fused_forward.1} parent=0
    #allocation2 [shape = 'u8[4096]{0}', space=vmem, size = 0x1000, scoped, tag = 'input window, operand 0, single buffered']
    #allocation3 [shape = 's32[1]{0}', space=sflag, size = 0x4, scoped, tag = 'scoped memory for _fused_forward.1']
    #allocation4 [shape = 'u8[16384]{0}', space=vmem, size = 0x4000, scoped, tag = 'input window, operand 1, single buffered']
    #allocation5 [shape = 's32[1]{0}', space=sflag, size = 0x4, scoped, tag = 'scoped memory for _fused_forward.1']
    #allocation6 [shape = 'u8[32768]{0}', space=vmem, size = 0x8000, scoped, tag = 'input window, operand 3, single buffered']
    #allocation7 [shape = 'u8[16384]{0}', space=vmem, size = 0x4000, scoped, tag = 'input window, operand 5, single buffered']
    #allocation8 [shape = 's32[1]{0}', space=sflag, size = 0x4, scoped, tag = 'scoped memory for _fused_forward.1']
    #allocation9 [shape = 'u8[524288]{0}', space=vmem, size = 0x80000, scoped, tag = 'input window, operand 6, single buffered']
    %13 = vsyncpa [#allocation3], 0
    %14 = vsyncpa [#allocation5], 0
    %15 = vsyncpa [#allocation8], 0
    // Predicated region
    $region2: #{_fused_forward.1} parent=1 // pred_check
      _
    $region3: #{_fused_forward.1} parent=1 // pred_check_branch
      %17 = sbr.rel (0) target = $region5
    $region4: #{_fused_forward.1} parent=1 // pred_region
      %19 = vsyncadd [#allocation3], 0
      %s21 = sshll.u32 %s0, 4
      %s22 = int_to_ptr.hbm [resolvable:$true] %s21
      %s23 = sshll.u32 [#allocation2], 4
      %s24 = int_to_ptr.vmem [resolvable:$true] %s23
      %26 = dma.hbm_to_vmem [thread:$0]  %s22, 128, %s24, [#allocation3]
    $region5: #{_fused_forward.1} parent=1 // pred_fallthru
      _
    // Predicated region
    $region6: #{_fused_forward.1} parent=1 // pred_check
      _
    $region7: #{_fused_forward.1} parent=1 // pred_check_branch
      %28 = sbr.rel (0) target = $region9
    $region8: #{_fused_forward.1} parent=1 // pred_region
      %30 = vsyncadd [#allocation5], 0
      %s31 = sshll.u32 %s1, 4
      %s32 = int_to_ptr.hbm [resolvable:$true] %s31
      %s33 = sshll.u32 [#allocation4], 4
      %s34 = int_to_ptr.vmem [resolvable:$true] %s33
      %39 = dma.hbm_to_vmem [thread:$0]  %s32, 512, %s34, [#allocation5], 64, 64, 4
    $region9: #{_fused_forward.1} parent=1 // pred_fallthru
      _
    // Predicated region
    $region10: #{_fused_forward.1} parent=1 // pred_check
      _
    $region11: #{_fused_forward.1} parent=1 // pred_check_branch
      %41 = sbr.rel (0) target = $region13
    $region12: #{_fused_forward.1} parent=1 // pred_region
      _
    $region13: #{_fused_forward.1} parent=1 // pred_fallthru
      _
    // Predicated region
    $region14: #{_fused_forward.1} parent=1 // pred_check
      _
    $region15: #{_fused_forward.1} parent=1 // pred_check_branch
      %43 = sbr.rel (0) target = $region17
    $region16: #{_fused_forward.1} parent=1 // pred_region
      %45 = vsyncadd [#allocation5], 0
      %s46 = sshll.u32 %s3, 4
      %s47 = int_to_ptr.hbm [resolvable:$true] %s46
      %s48 = sshll.u32 [#allocation6], 4
      %s49 = int_to_ptr.vmem [resolvable:$true] %s48
      %54 = dma.hbm_to_vmem [thread:$0]  %s47, 1024, %s49, [#allocation5], 64, 64, 4
    $region17: #{_fused_forward.1} parent=1 // pred_fallthru
      _
    // Predicated region
    $region18: #{_fused_forward.1} parent=1 // pred_check
      _
    $region19: #{_fused_forward.1} parent=1 // pred_check_branch
      %56 = sbr.rel (0) target = $region21
    $region20: #{_fused_forward.1} parent=1 // pred_region
      _
    $region21: #{_fused_forward.1} parent=1 // pred_fallthru
      _
    // Predicated region
    $region22: #{_fused_forward.1} parent=1 // pred_check
      _
    $region23: #{_fused_forward.1} parent=1 // pred_check_branch
      %58 = sbr.rel (0) target = $region25
    $region24: #{_fused_forward.1} parent=1 // pred_region
      %60 = vsyncadd [#allocation8], 0
      %s62 = sshll.u32 %s5, 4
      %s63 = int_to_ptr.hbm [resolvable:$true] %s62
      %s64 = sshll.u32 [#allocation7], 4
      %s65 = int_to_ptr.vmem [resolvable:$true] %s64
      %67 = dma.hbm_to_vmem [thread:$0]  %s63, 512, %s65, [#allocation8]
    $region25: #{_fused_forward.1} parent=1 // pred_fallthru
      _
    // Predicated region
    $region26: #{_fused_forward.1} parent=1 // pred_check
      _
    $region27: #{_fused_forward.1} parent=1 // pred_check_branch
      %69 = sbr.rel (0) target = $region29
    $region28: #{_fused_forward.1} parent=1 // pred_region
      %71 = vsyncadd [#allocation8], 0
      %s72 = sshll.u32 %s6, 4
      %s73 = int_to_ptr.hbm [resolvable:$true] %s72
      %s74 = sshll.u32 [#allocation9], 4
      %s75 = int_to_ptr.vmem [resolvable:$true] %s74
      %80 = dma.hbm_to_vmem [thread:$0]  %s73, 16384, %s75, [#allocation8], 256, 256, 16
    $region29: #{_fused_forward.1} parent=1 // pred_fallthru
      _
    // Predicated region
    $region30: #{_fused_forward.1} parent=1 // pred_check
      _
    $region31: #{_fused_forward.1} parent=1 // pred_check_branch
      %82 = sbr.rel (0) target = $region33
    $region32: #{_fused_forward.1} parent=1 // pred_region
      _
    $region33: #{_fused_forward.1} parent=1 // pred_fallthru
      _
    // Predicated region
    $region34: #{_fused_forward.1} parent=1 // pred_check
      _
    $region35: #{_fused_forward.1} parent=1 // pred_check_branch
      %84 = sbr.rel (0) target = $region37
    $region36: #{_fused_forward.1} parent=1 // pred_region
      %86 = dma.done [#allocation3], 128
    $region37: #{_fused_forward.1} parent=1 // pred_fallthru
      _
    // Predicated region
    $region38: #{_fused_forward.1} parent=1 // pred_check
      _
    $region39: #{_fused_forward.1} parent=1 // pred_check_branch
      %88 = sbr.rel (0) target = $region41
    $region40: #{_fused_forward.1} parent=1 // pred_region
      %90 = dma.done [#allocation5], 512
    $region41: #{_fused_forward.1} parent=1 // pred_fallthru
      _
    // Predicated region
    $region42: #{_fused_forward.1} parent=1 // pred_check
      _
    $region43: #{_fused_forward.1} parent=1 // pred_check_branch
      %92 = sbr.rel (0) target = $region45
    $region44: #{_fused_forward.1} parent=1 // pred_region
      %94 = dma.done [#allocation5], 1024
    $region45: #{_fused_forward.1} parent=1 // pred_fallthru
      _
    // Predicated region
    $region46: #{_fused_forward.1} parent=1 // pred_check
      _
    $region47: #{_fused_forward.1} parent=1 // pred_check_branch
      %96 = sbr.rel (0) target = $region49
    $region48: #{_fused_forward.1} parent=1 // pred_region
      %98 = dma.done [#allocation8], 512
    $region49: #{_fused_forward.1} parent=1 // pred_fallthru
      _
    // Predicated region
    $region50: #{_fused_forward.1} parent=1 // pred_check
      _
    $region51: #{_fused_forward.1} parent=1 // pred_check_branch
      %100 = sbr.rel (0) target = $region53
    $region52: #{_fused_forward.1} parent=1 // pred_region
      %102 = dma.done [#allocation8], 16384
    $region53: #{_fused_forward.1} parent=1 // pred_fallthru
      _
    %v104 = vld [vmem:[#allocation2] sm:$0xff]
    %v105 = vpack.c.bf16 %v104, %v104
    %v106 = vld [vmem:[#allocation4] sm:$0xf]
    %v107 = vld [vmem:[#allocation4 + $0x4] sm:$0xf]
    %v108 = vld [vmem:[#allocation4 + $0x8] sm:$0xf]
    %v109 = vld [vmem:[#allocation4 + $0xc] sm:$0xf]
    %v110 = vld [vmem:[#allocation4 + $0x10] sm:$0xf]
    %v111 = vld [vmem:[#allocation4 + $0x14] sm:$0xf]
    %v112 = vld [vmem:[#allocation4 + $0x18] sm:$0xf]
    %v113 = vld [vmem:[#allocation4 + $0x1c] sm:$0xf]
    %v114 = vld [vmem:[%s2] sm:$0x1]
    %v116 = vperm.slane %v114, 0
    %v126 = vunpack.c.l.b16 %v106
    %v127 = vunpack.c.l.b16 %v107
    %v128 = vunpack.c.l.b16 %v108
    %v129 = vunpack.c.l.b16 %v109
    %v130 = vunpack.c.l.b16 %v110
    %v131 = vunpack.c.l.b16 %v111
    %v132 = vunpack.c.l.b16 %v112
    %v133 = vunpack.c.l.b16 %v113
    %v134 = vpack.c.b16 %v127, %v126
    %v135 = vpack.c.b16 %v129, %v128
    %v136 = vpack.c.b16 %v131, %v130
    %v137 = vpack.c.b16 %v133, %v132
    %vm142 = vcmask 523264
    %v144 = vsel %vm142, %v105, 0
    %146 = vmatpush.bf16.msra.mxu0 0
    %147 = vmatpush.bf16.msra.mxu0 0
    %148 = vmatpush.bf16.msra.mxu0 0
    %149 = vmatpush.bf16.msra.mxu0 0
    %150 = vmatpush.bf16.msra.mxu0 %v137
    %151 = vmatpush.bf16.msra.mxu0 %v136
    %152 = vmatpush.bf16.msra.mxu0 %v135
    %153 = vmatpush.bf16.msra.mxu0 %v134
    %154 = vmatmul.bf16.gmra.mxu0 %v144
    %v155 = vpop.f32.mrf.mxu0
    %v156 = vadd.f32 %v116, %v155
    %v157 = vpop.f32.mrf.mxu0
    %158 = vdwg.mxu0
    %v159 = vxor.u32 %v156, 2147483648
    %v160 = vmul.f32 %v159, 1.442695
    %v161 = vpow.pop %v160
    %v162 = vadd.f32 %v161, 1.0
    %v163 = vrcp.pop %v162
    %v164 = vmul.f32 %v162, %v163
    %v165 = vsub.f32 1.0, %v164
    %v166 = vmul.f32 %v163, %v165
    %v167 = vadd.f32 %v163, %v166
    %vm168 = vweird.f32 %v162
    %vm169 = vweird.f32 %v163
    %vm170 = vmor %vm168, %vm169
    %v171 = vsel %vm170, %v163, %v167
    %v172 = vand.u32 2147483647, %v162
    %vm173 = vcmp.eq.f32.partialorder %v172, 8.507059e+37
    %v174 = vand.u32 %v162, 2147483648
    %v175 = vor.u32 1.1754944e-38, %v174
    %v176 = vsel %vm173, %v175, %v171
    %v177 = vmul.f32 1.0, %v176
    %v178 = vmul.f32 %v156, %v177
    %v179 = vpack.c.bf16 %v178, %v178
    %v180 = vld [vmem:[#allocation6] sm:$0xf]
    %v181 = vld [vmem:[#allocation6 + $0x4] sm:$0xf]
    %v182 = vld [vmem:[#allocation6 + $0x8] sm:$0xf]
    %v183 = vld [vmem:[#allocation6 + $0xc] sm:$0xf]
    %v184 = vld [vmem:[#allocation6 + $0x10] sm:$0xf]
    %v185 = vld [vmem:[#allocation6 + $0x14] sm:$0xf]
    %v186 = vld [vmem:[#allocation6 + $0x18] sm:$0xf]
    %v187 = vld [vmem:[#allocation6 + $0x1c] sm:$0xf]
    %v188 = vld [vmem:[#allocation6 + $0x20] sm:$0xf]
    %v189 = vld [vmem:[#allocation6 + $0x24] sm:$0xf]
    %v190 = vld [vmem:[#allocation6 + $0x28] sm:$0xf]
    %v191 = vld [vmem:[#allocation6 + $0x2c] sm:$0xf]
    %v192 = vld [vmem:[#allocation6 + $0x30] sm:$0xf]
    %v193 = vld [vmem:[#allocation6 + $0x34] sm:$0xf]
    %v194 = vld [vmem:[#allocation6 + $0x38] sm:$0xf]
    %v195 = vld [vmem:[#allocation6 + $0x3c] sm:$0xf]
    %v196 = vld [vmem:[%s4] sm:$0x1]
    %v198 = vperm.slane %v196, 0
    %v216 = vunpack.c.l.b16 %v180
    %v217 = vunpack.c.l.b16 %v181
    %v218 = vunpack.c.l.b16 %v182
    %v219 = vunpack.c.l.b16 %v183
    %v220 = vunpack.c.l.b16 %v184
    %v221 = vunpack.c.l.b16 %v185
    %v222 = vunpack.c.l.b16 %v186
    %v223 = vunpack.c.l.b16 %v187
    %v224 = vunpack.c.l.b16 %v188
    %v225 = vunpack.c.l.b16 %v189
    %v226 = vunpack.c.l.b16 %v190
    %v227 = vunpack.c.l.b16 %v191
    %v228 = vunpack.c.l.b16 %v192
    %v229 = vunpack.c.l.b16 %v193
    %v230 = vunpack.c.l.b16 %v194
    %v231 = vunpack.c.l.b16 %v195
    %v232 = vpack.c.b16 %v217, %v216
    %v233 = vpack.c.b16 %v219, %v218
    %v234 = vpack.c.b16 %v221, %v220
    %v235 = vpack.c.b16 %v223, %v222
    %v236 = vpack.c.b16 %v225, %v224
    %v237 = vpack.c.b16 %v227, %v226
    %v238 = vpack.c.b16 %v229, %v228
    %v239 = vpack.c.b16 %v231, %v230
    %248 = vmatpush.bf16.msra.mxu0 %v239
    %249 = vmatpush.bf16.msra.mxu0 %v238
    %250 = vmatpush.bf16.msra.mxu0 %v237
    %251 = vmatpush.bf16.msra.mxu0 %v236
    %252 = vmatpush.bf16.msra.mxu0 %v235
    %253 = vmatpush.bf16.msra.mxu0 %v234
    %254 = vmatpush.bf16.msra.mxu0 %v233
    %255 = vmatpush.bf16.msra.mxu0 %v232
    %256 = vmatmul.bf16.gmra.mxu0 %v179
    %v257 = vpop.f32.mrf.mxu0
    %v258 = vadd.f32 %v198, %v257
    %v259 = vpop.f32.mrf.mxu0
    %260 = vdwg.mxu0
    %v261 = vld [vmem:[#allocation7] sm:$0xff]
    %v262 = vld [vmem:[#allocation7 + $0x8] sm:$0xff]
    %v263 = vld [vmem:[#allocation7 + $0x10] sm:$0xff]
    %v264 = vld [vmem:[#allocation7 + $0x18] sm:$0xff]
    %v265 = vpack.c.bf16 %v261, %v261
    %v266 = vpack.c.bf16 %v262, %v262
    %v267 = vpack.c.bf16 %v263, %v263
    %v268 = vpack.c.bf16 %v264, %v264
    %v269 = vld [vmem:[#allocation9] sm:$0xff]
    %v270 = vld [vmem:[#allocation9 + $0x8] sm:$0xff]
    %v271 = vld [vmem:[#allocation9 + $0x10] sm:$0xff]
    %v272 = vld [vmem:[#allocation9 + $0x18] sm:$0xff]
    %v273 = vld [vmem:[#allocation9 + $0x20] sm:$0xff]
    %v274 = vld [vmem:[#allocation9 + $0x28] sm:$0xff]
    %v275 = vld [vmem:[#allocation9 + $0x30] sm:$0xff]
    %v276 = vld [vmem:[#allocation9 + $0x38] sm:$0xff]
    %v277 = vld [vmem:[#allocation9 + $0x40] sm:$0xff]
    %v278 = vld [vmem:[#allocation9 + $0x48] sm:$0xff]
    %v279 = vld [vmem:[#allocation9 + $0x50] sm:$0xff]
    %v280 = vld [vmem:[#allocation9 + $0x58] sm:$0xff]
    %v281 = vld [vmem:[#allocation9 + $0x60] sm:$0xff]
    %v282 = vld [vmem:[#allocation9 + $0x68] sm:$0xff]
    %v283 = vld [vmem:[#allocation9 + $0x70] sm:$0xff]
    %v284 = vld [vmem:[#allocation9 + $0x78] sm:$0xff]
    %v285 = vld [vmem:[#allocation9 + $0x80] sm:$0xff]
    %v286 = vld [vmem:[#allocation9 + $0x88] sm:$0xff]
    %v287 = vld [vmem:[#allocation9 + $0x90] sm:$0xff]
    %v288 = vld [vmem:[#allocation9 + $0x98] sm:$0xff]
    %v289 = vld [vmem:[#allocation9 + $0xa0] sm:$0xff]
    %v290 = vld [vmem:[#allocation9 + $0xa8] sm:$0xff]
    %v291 = vld [vmem:[#allocation9 + $0xb0] sm:$0xff]
    %v292 = vld [vmem:[#allocation9 + $0xb8] sm:$0xff]
    %v293 = vld [vmem:[#allocation9 + $0xc0] sm:$0xff]
    %v294 = vld [vmem:[#allocation9 + $0xc8] sm:$0xff]
    %v295 = vld [vmem:[#allocation9 + $0xd0] sm:$0xff]
    %v296 = vld [vmem:[#allocation9 + $0xd8] sm:$0xff]
    %v297 = vld [vmem:[#allocation9 + $0xe0] sm:$0xff]
    %v298 = vld [vmem:[#allocation9 + $0xe8] sm:$0xff]
    %v299 = vld [vmem:[#allocation9 + $0xf0] sm:$0xff]
    %v300 = vld [vmem:[#allocation9 + $0xf8] sm:$0xff]
    %v301 = vld [vmem:[#allocation9 + $0x100] sm:$0xff]
    %v302 = vld [vmem:[#allocation9 + $0x108] sm:$0xff]
    %v303 = vld [vmem:[#allocation9 + $0x110] sm:$0xff]
    %v304 = vld [vmem:[#allocation9 + $0x118] sm:$0xff]
    %v305 = vld [vmem:[#allocation9 + $0x120] sm:$0xff]
    %v306 = vld [vmem:[#allocation9 + $0x128] sm:$0xff]
    %v307 = vld [vmem:[#allocation9 + $0x130] sm:$0xff]
    %v308 = vld [vmem:[#allocation9 + $0x138] sm:$0xff]
    %v309 = vld [vmem:[#allocation9 + $0x140] sm:$0xff]
    %v310 = vld [vmem:[#allocation9 + $0x148] sm:$0xff]
    %v311 = vld [vmem:[#allocation9 + $0x150] sm:$0xff]
    %v312 = vld [vmem:[#allocation9 + $0x158] sm:$0xff]
    %v313 = vld [vmem:[#allocation9 + $0x160] sm:$0xff]
    %v314 = vld [vmem:[#allocation9 + $0x168] sm:$0xff]
    %v315 = vld [vmem:[#allocation9 + $0x170] sm:$0xff]
    %v316 = vld [vmem:[#allocation9 + $0x178] sm:$0xff]
    %v317 = vld [vmem:[#allocation9 + $0x180] sm:$0xff]
    %v318 = vld [vmem:[#allocation9 + $0x188] sm:$0xff]
    %v319 = vld [vmem:[#allocation9 + $0x190] sm:$0xff]
    %v320 = vld [vmem:[#allocation9 + $0x198] sm:$0xff]
    %v321 = vld [vmem:[#allocation9 + $0x1a0] sm:$0xff]
    %v322 = vld [vmem:[#allocation9 + $0x1a8] sm:$0xff]
    %v323 = vld [vmem:[#allocation9 + $0x1b0] sm:$0xff]
    %v324 = vld [vmem:[#allocation9 + $0x1b8] sm:$0xff]
    %v325 = vld [vmem:[#allocation9 + $0x1c0] sm:$0xff]
    %v326 = vld [vmem:[#allocation9 + $0x1c8] sm:$0xff]
    %v327 = vld [vmem:[#allocation9 + $0x1d0] sm:$0xff]
    %v328 = vld [vmem:[#allocation9 + $0x1d8] sm:$0xff]
    %v329 = vld [vmem:[#allocation9 + $0x1e0] sm:$0xff]
    %v330 = vld [vmem:[#allocation9 + $0x1e8] sm:$0xff]
    %v331 = vld [vmem:[#allocation9 + $0x1f0] sm:$0xff]
    %v332 = vld [vmem:[#allocation9 + $0x1f8] sm:$0xff]
    %v333 = vld [vmem:[#allocation9 + $0x200] sm:$0xff]
    %v334 = vld [vmem:[#allocation9 + $0x208] sm:$0xff]
    %v335 = vld [vmem:[#allocation9 + $0x210] sm:$0xff]
    %v336 = vld [vmem:[#allocation9 + $0x218] sm:$0xff]
    %v337 = vld [vmem:[#allocation9 + $0x220] sm:$0xff]
    %v338 = vld [vmem:[#allocation9 + $0x228] sm:$0xff]
    %v339 = vld [vmem:[#allocation9 + $0x230] sm:$0xff]
    %v340 = vld [vmem:[#allocation9 + $0x238] sm:$0xff]
    %v341 = vld [vmem:[#allocation9 + $0x240] sm:$0xff]
    %v342 = vld [vmem:[#allocation9 + $0x248] sm:$0xff]
    %v343 = vld [vmem:[#allocation9 + $0x250] sm:$0xff]
    %v344 = vld [vmem:[#allocation9 + $0x258] sm:$0xff]
    %v345 = vld [vmem:[#allocation9 + $0x260] sm:$0xff]
    %v346 = vld [vmem:[#allocation9 + $0x268] sm:$0xff]
    %v347 = vld [vmem:[#allocation9 + $0x270] sm:$0xff]
    %v348 = vld [vmem:[#allocation9 + $0x278] sm:$0xff]
    %v349 = vld [vmem:[#allocation9 + $0x280] sm:$0xff]
    %v350 = vld [vmem:[#allocation9 + $0x288] sm:$0xff]
    %v351 = vld [vmem:[#allocation9 + $0x290] sm:$0xff]
    %v352 = vld [vmem:[#allocation9 + $0x298] sm:$0xff]
    %v353 = vld [vmem:[#allocation9 + $0x2a0] sm:$0xff]
    %v354 = vld [vmem:[#allocation9 + $0x2a8] sm:$0xff]
    %v355 = vld [vmem:[#allocation9 + $0x2b0] sm:$0xff]
    %v356 = vld [vmem:[#allocation9 + $0x2b8] sm:$0xff]
    %v357 = vld [vmem:[#allocation9 + $0x2c0] sm:$0xff]
    %v358 = vld [vmem:[#allocation9 + $0x2c8] sm:$0xff]
    %v359 = vld [vmem:[#allocation9 + $0x2d0] sm:$0xff]
    %v360 = vld [vmem:[#allocation9 + $0x2d8] sm:$0xff]
    %v361 = vld [vmem:[#allocation9 + $0x2e0] sm:$0xff]
    %v362 = vld [vmem:[#allocation9 + $0x2e8] sm:$0xff]
    %v363 = vld [vmem:[#allocation9 + $0x2f0] sm:$0xff]
    %v364 = vld [vmem:[#allocation9 + $0x2f8] sm:$0xff]
    %v365 = vld [vmem:[#allocation9 + $0x300] sm:$0xff]
    %v366 = vld [vmem:[#allocation9 + $0x308] sm:$0xff]
    %v367 = vld [vmem:[#allocation9 + $0x310] sm:$0xff]
    %v368 = vld [vmem:[#allocation9 + $0x318] sm:$0xff]
    %v369 = vld [vmem:[#allocation9 + $0x320] sm:$0xff]
    %v370 = vld [vmem:[#allocation9 + $0x328] sm:$0xff]
    %v371 = vld [vmem:[#allocation9 + $0x330] sm:$0xff]
    %v372 = vld [vmem:[#allocation9 + $0x338] sm:$0xff]
    %v373 = vld [vmem:[#allocation9 + $0x340] sm:$0xff]
    %v374 = vld [vmem:[#allocation9 + $0x348] sm:$0xff]
    %v375 = vld [vmem:[#allocation9 + $0x350] sm:$0xff]
    %v376 = vld [vmem:[#allocation9 + $0x358] sm:$0xff]
    %v377 = vld [vmem:[#allocation9 + $0x360] sm:$0xff]
    %v378 = vld [vmem:[#allocation9 + $0x368] sm:$0xff]
    %v379 = vld [vmem:[#allocation9 + $0x370] sm:$0xff]
    %v380 = vld [vmem:[#allocation9 + $0x378] sm:$0xff]
    %v381 = vld [vmem:[#allocation9 + $0x380] sm:$0xff]
    %v382 = vld [vmem:[#allocation9 + $0x388] sm:$0xff]
    %v383 = vld [vmem:[#allocation9 + $0x390] sm:$0xff]
    %v384 = vld [vmem:[#allocation9 + $0x398] sm:$0xff]
    %v385 = vld [vmem:[#allocation9 + $0x3a0] sm:$0xff]
    %v386 = vld [vmem:[#allocation9 + $0x3a8] sm:$0xff]
    %v387 = vld [vmem:[#allocation9 + $0x3b0] sm:$0xff]
    %v388 = vld [vmem:[#allocation9 + $0x3b8] sm:$0xff]
    %v389 = vld [vmem:[#allocation9 + $0x3c0] sm:$0xff]
    %v390 = vld [vmem:[#allocation9 + $0x3c8] sm:$0xff]
    %v391 = vld [vmem:[#allocation9 + $0x3d0] sm:$0xff]
    %v392 = vld [vmem:[#allocation9 + $0x3d8] sm:$0xff]
    %v393 = vld [vmem:[#allocation9 + $0x3e0] sm:$0xff]
    %v394 = vld [vmem:[#allocation9 + $0x3e8] sm:$0xff]
    %v395 = vld [vmem:[#allocation9 + $0x3f0] sm:$0xff]
    %v396 = vld [vmem:[#allocation9 + $0x3f8] sm:$0xff]
    %v397 = vld [vmem:[%s7] sm:$0xf]
    %v399 = vperm.slane %v397, 0
    %v400 = vperm.slane %v397, 1
    %v401 = vperm.slane %v397, 2
    %v402 = vperm.slane %v397, 3
    %v535 = vunpack.c.l.b16 %v269
    %v536 = vunpack.c.h.b16 %v269
    %v537 = vunpack.c.l.b16 %v270
    %v538 = vunpack.c.h.b16 %v270
    %v539 = vunpack.c.l.b16 %v271
    %v540 = vunpack.c.h.b16 %v271
    %v541 = vunpack.c.l.b16 %v272
    %v542 = vunpack.c.h.b16 %v272
    %v543 = vunpack.c.l.b16 %v273
    %v544 = vunpack.c.h.b16 %v273
    %v545 = vunpack.c.l.b16 %v274
    %v546 = vunpack.c.h.b16 %v274
    %v547 = vunpack.c.l.b16 %v275
    %v548 = vunpack.c.h.b16 %v275
    %v549 = vunpack.c.l.b16 %v276
    %v550 = vunpack.c.h.b16 %v276
    %v551 = vunpack.c.l.b16 %v277
    %v552 = vunpack.c.h.b16 %v277
    %v553 = vunpack.c.l.b16 %v278
    %v554 = vunpack.c.h.b16 %v278
    %v555 = vunpack.c.l.b16 %v279
    %v556 = vunpack.c.h.b16 %v279
    %v557 = vunpack.c.l.b16 %v280
    %v558 = vunpack.c.h.b16 %v280
    %v559 = vunpack.c.l.b16 %v281
    %v560 = vunpack.c.h.b16 %v281
    %v561 = vunpack.c.l.b16 %v282
    %v562 = vunpack.c.h.b16 %v282
    %v563 = vunpack.c.l.b16 %v283
    %v564 = vunpack.c.h.b16 %v283
    %v565 = vunpack.c.l.b16 %v284
    %v566 = vunpack.c.h.b16 %v284
    %v567 = vunpack.c.l.b16 %v285
    %v568 = vunpack.c.h.b16 %v285
    %v569 = vunpack.c.l.b16 %v286
    %v570 = vunpack.c.h.b16 %v286
    %v571 = vunpack.c.l.b16 %v287
    %v572 = vunpack.c.h.b16 %v287
    %v573 = vunpack.c.l.b16 %v288
    %v574 = vunpack.c.h.b16 %v288
    %v575 = vunpack.c.l.b16 %v289
    %v576 = vunpack.c.h.b16 %v289
    %v577 = vunpack.c.l.b16 %v290
    %v578 = vunpack.c.h.b16 %v290
    %v579 = vunpack.c.l.b16 %v291
    %v580 = vunpack.c.h.b16 %v291
    %v581 = vunpack.c.l.b16 %v292
    %v582 = vunpack.c.h.b16 %v292
    %v583 = vunpack.c.l.b16 %v293
    %v584 = vunpack.c.h.b16 %v293
    %v585 = vunpack.c.l.b16 %v294
    %v586 = vunpack.c.h.b16 %v294
    %v587 = vunpack.c.l.b16 %v295
    %v588 = vunpack.c.h.b16 %v295
    %v589 = vunpack.c.l.b16 %v296
    %v590 = vunpack.c.h.b16 %v296
    %v591 = vunpack.c.l.b16 %v297
    %v592 = vunpack.c.h.b16 %v297
    %v593 = vunpack.c.l.b16 %v298
    %v594 = vunpack.c.h.b16 %v298
    %v595 = vunpack.c.l.b16 %v299
    %v596 = vunpack.c.h.b16 %v299
    %v597 = vunpack.c.l.b16 %v300
    %v598 = vunpack.c.h.b16 %v300
    %v599 = vunpack.c.l.b16 %v301
    %v600 = vunpack.c.h.b16 %v301
    %v601 = vunpack.c.l.b16 %v302
    %v602 = vunpack.c.h.b16 %v302
    %v603 = vunpack.c.l.b16 %v303
    %v604 = vunpack.c.h.b16 %v303
    %v605 = vunpack.c.l.b16 %v304
    %v606 = vunpack.c.h.b16 %v304
    %v607 = vunpack.c.l.b16 %v305
    %v608 = vunpack.c.h.b16 %v305
    %v609 = vunpack.c.l.b16 %v306
    %v610 = vunpack.c.h.b16 %v306
    %v611 = vunpack.c.l.b16 %v307
    %v612 = vunpack.c.h.b16 %v307
    %v613 = vunpack.c.l.b16 %v308
    %v614 = vunpack.c.h.b16 %v308
    %v615 = vunpack.c.l.b16 %v309
    %v616 = vunpack.c.h.b16 %v309
    %v617 = vunpack.c.l.b16 %v310
    %v618 = vunpack.c.h.b16 %v310
    %v619 = vunpack.c.l.b16 %v311
    %v620 = vunpack.c.h.b16 %v311
    %v621 = vunpack.c.l.b16 %v312
    %v622 = vunpack.c.h.b16 %v312
    %v623 = vunpack.c.l.b16 %v313
    %v624 = vunpack.c.h.b16 %v313
    %v625 = vunpack.c.l.b16 %v314
    %v626 = vunpack.c.h.b16 %v314
    %v627 = vunpack.c.l.b16 %v315
    %v628 = vunpack.c.h.b16 %v315
    %v629 = vunpack.c.l.b16 %v316
    %v630 = vunpack.c.h.b16 %v316
    %v631 = vunpack.c.l.b16 %v317
    %v632 = vunpack.c.h.b16 %v317
    %v633 = vunpack.c.l.b16 %v318
    %v634 = vunpack.c.h.b16 %v318
    %v635 = vunpack.c.l.b16 %v319
    %v636 = vunpack.c.h.b16 %v319
    %v637 = vunpack.c.l.b16 %v320
    %v638 = vunpack.c.h.b16 %v320
    %v639 = vunpack.c.l.b16 %v321
    %v640 = vunpack.c.h.b16 %v321
    %v641 = vunpack.c.l.b16 %v322
    %v642 = vunpack.c.h.b16 %v322
    %v643 = vunpack.c.l.b16 %v323
    %v644 = vunpack.c.h.b16 %v323
    %v645 = vunpack.c.l.b16 %v324
    %v646 = vunpack.c.h.b16 %v324
    %v647 = vunpack.c.l.b16 %v325
    %v648 = vunpack.c.h.b16 %v325
    %v649 = vunpack.c.l.b16 %v326
    %v650 = vunpack.c.h.b16 %v326
    %v651 = vunpack.c.l.b16 %v327
    %v652 = vunpack.c.h.b16 %v327
    %v653 = vunpack.c.l.b16 %v328
    %v654 = vunpack.c.h.b16 %v328
    %v655 = vunpack.c.l.b16 %v329
    %v656 = vunpack.c.h.b16 %v329
    %v657 = vunpack.c.l.b16 %v330
    %v658 = vunpack.c.h.b16 %v330
    %v659 = vunpack.c.l.b16 %v331
    %v660 = vunpack.c.h.b16 %v331
    %v661 = vunpack.c.l.b16 %v332
    %v662 = vunpack.c.h.b16 %v332
    %v663 = vunpack.c.l.b16 %v333
    %v664 = vunpack.c.h.b16 %v333
    %v665 = vunpack.c.l.b16 %v334
    %v666 = vunpack.c.h.b16 %v334
    %v667 = vunpack.c.l.b16 %v335
    %v668 = vunpack.c.h.b16 %v335
    %v669 = vunpack.c.l.b16 %v336
    %v670 = vunpack.c.h.b16 %v336
    %v671 = vunpack.c.l.b16 %v337
    %v672 = vunpack.c.h.b16 %v337
    %v673 = vunpack.c.l.b16 %v338
    %v674 = vunpack.c.h.b16 %v338
    %v675 = vunpack.c.l.b16 %v339
    %v676 = vunpack.c.h.b16 %v339
    %v677 = vunpack.c.l.b16 %v340
    %v678 = vunpack.c.h.b16 %v340
    %v679 = vunpack.c.l.b16 %v341
    %v680 = vunpack.c.h.b16 %v341
    %v681 = vunpack.c.l.b16 %v342
    %v682 = vunpack.c.h.b16 %v342
    %v683 = vunpack.c.l.b16 %v343
    %v684 = vunpack.c.h.b16 %v343
    %v685 = vunpack.c.l.b16 %v344
    %v686 = vunpack.c.h.b16 %v344
    %v687 = vunpack.c.l.b16 %v345
    %v688 = vunpack.c.h.b16 %v345
    %v689 = vunpack.c.l.b16 %v346
    %v690 = vunpack.c.h.b16 %v346
    %v691 = vunpack.c.l.b16 %v347
    %v692 = vunpack.c.h.b16 %v347
    %v693 = vunpack.c.l.b16 %v348
    %v694 = vunpack.c.h.b16 %v348
    %v695 = vunpack.c.l.b16 %v349
    %v696 = vunpack.c.h.b16 %v349
    %v697 = vunpack.c.l.b16 %v350
    %v698 = vunpack.c.h.b16 %v350
    %v699 = vunpack.c.l.b16 %v351
    %v700 = vunpack.c.h.b16 %v351
    %v701 = vunpack.c.l.b16 %v352
    %v702 = vunpack.c.h.b16 %v352
    %v703 = vunpack.c.l.b16 %v353
    %v704 = vunpack.c.h.b16 %v353
    %v705 = vunpack.c.l.b16 %v354
    %v706 = vunpack.c.h.b16 %v354
    %v707 = vunpack.c.l.b16 %v355
    %v708 = vunpack.c.h.b16 %v355
    %v709 = vunpack.c.l.b16 %v356
    %v710 = vunpack.c.h.b16 %v356
    %v711 = vunpack.c.l.b16 %v357
    %v712 = vunpack.c.h.b16 %v357
    %v713 = vunpack.c.l.b16 %v358
    %v714 = vunpack.c.h.b16 %v358
    %v715 = vunpack.c.l.b16 %v359
    %v716 = vunpack.c.h.b16 %v359
    %v717 = vunpack.c.l.b16 %v360
    %v718 = vunpack.c.h.b16 %v360
    %v719 = vunpack.c.l.b16 %v361
    %v720 = vunpack.c.h.b16 %v361
    %v721 = vunpack.c.l.b16 %v362
    %v722 = vunpack.c.h.b16 %v362
    %v723 = vunpack.c.l.b16 %v363
    %v724 = vunpack.c.h.b16 %v363
    %v725 = vunpack.c.l.b16 %v364
    %v726 = vunpack.c.h.b16 %v364
    %v727 = vunpack.c.l.b16 %v365
    %v728 = vunpack.c.h.b16 %v365
    %v729 = vunpack.c.l.b16 %v366
    %v730 = vunpack.c.h.b16 %v366
    %v731 = vunpack.c.l.b16 %v367
    %v732 = vunpack.c.h.b16 %v367
    %v733 = vunpack.c.l.b16 %v368
    %v734 = vunpack.c.h.b16 %v368
    %v735 = vunpack.c.l.b16 %v369
    %v736 = vunpack.c.h.b16 %v369
    %v737 = vunpack.c.l.b16 %v370
    %v738 = vunpack.c.h.b16 %v370
    %v739 = vunpack.c.l.b16 %v371
    %v740 = vunpack.c.h.b16 %v371
    %v741 = vunpack.c.l.b16 %v372
    %v742 = vunpack.c.h.b16 %v372
    %v743 = vunpack.c.l.b16 %v373
    %v744 = vunpack.c.h.b16 %v373
    %v745 = vunpack.c.l.b16 %v374
    %v746 = vunpack.c.h.b16 %v374
    %v747 = vunpack.c.l.b16 %v375
    %v748 = vunpack.c.h.b16 %v375
    %v749 = vunpack.c.l.b16 %v376
    %v750 = vunpack.c.h.b16 %v376
    %v751 = vunpack.c.l.b16 %v377
    %v752 = vunpack.c.h.b16 %v377
    %v753 = vunpack.c.l.b16 %v378
    %v754 = vunpack.c.h.b16 %v378
    %v755 = vunpack.c.l.b16 %v379
    %v756 = vunpack.c.h.b16 %v379
    %v757 = vunpack.c.l.b16 %v380
    %v758 = vunpack.c.h.b16 %v380
    %v759 = vunpack.c.l.b16 %v381
    %v760 = vunpack.c.h.b16 %v381
    %v761 = vunpack.c.l.b16 %v382
    %v762 = vunpack.c.h.b16 %v382
    %v763 = vunpack.c.l.b16 %v383
    %v764 = vunpack.c.h.b16 %v383
    %v765 = vunpack.c.l.b16 %v384
    %v766 = vunpack.c.h.b16 %v384
    %v767 = vunpack.c.l.b16 %v385
    %v768 = vunpack.c.h.b16 %v385
    %v769 = vunpack.c.l.b16 %v386
    %v770 = vunpack.c.h.b16 %v386
    %v771 = vunpack.c.l.b16 %v387
    %v772 = vunpack.c.h.b16 %v387
    %v773 = vunpack.c.l.b16 %v388
    %v774 = vunpack.c.h.b16 %v388
    %v775 = vunpack.c.l.b16 %v389
    %v776 = vunpack.c.h.b16 %v389
    %v777 = vunpack.c.l.b16 %v390
    %v778 = vunpack.c.h.b16 %v390
    %v779 = vunpack.c.l.b16 %v391
    %v780 = vunpack.c.h.b16 %v391
    %v781 = vunpack.c.l.b16 %v392
    %v782 = vunpack.c.h.b16 %v392
    %v783 = vunpack.c.l.b16 %v393
    %v784 = vunpack.c.h.b16 %v393
    %v785 = vunpack.c.l.b16 %v394
    %v786 = vunpack.c.h.b16 %v394
    %v787 = vunpack.c.l.b16 %v395
    %v788 = vunpack.c.h.b16 %v395
    %v789 = vunpack.c.l.b16 %v396
    %v790 = vunpack.c.h.b16 %v396
    %v791 = vpack.c.b16 %v539, %v535
    %v792 = vpack.c.b16 %v540, %v536
    %v793 = vpack.c.b16 %v541, %v537
    %v794 = vpack.c.b16 %v542, %v538
    %v795 = vpack.c.b16 %v547, %v543
    %v796 = vpack.c.b16 %v548, %v544
    %v797 = vpack.c.b16 %v549, %v545
    %v798 = vpack.c.b16 %v550, %v546
    %v799 = vpack.c.b16 %v555, %v551
    %v800 = vpack.c.b16 %v556, %v552
    %v801 = vpack.c.b16 %v557, %v553
    %v802 = vpack.c.b16 %v558, %v554
    %v803 = vpack.c.b16 %v563, %v559
    %v804 = vpack.c.b16 %v564, %v560
    %v805 = vpack.c.b16 %v565, %v561
    %v806 = vpack.c.b16 %v566, %v562
    %v807 = vpack.c.b16 %v571, %v567
    %v808 = vpack.c.b16 %v572, %v568
    %v809 = vpack.c.b16 %v573, %v569
    %v810 = vpack.c.b16 %v574, %v570
    %v811 = vpack.c.b16 %v579, %v575
    %v812 = vpack.c.b16 %v580, %v576
    %v813 = vpack.c.b16 %v581, %v577
    %v814 = vpack.c.b16 %v582, %v578
    %v815 = vpack.c.b16 %v587, %v583
    %v816 = vpack.c.b16 %v588, %v584
    %v817 = vpack.c.b16 %v589, %v585
    %v818 = vpack.c.b16 %v590, %v586
    %v819 = vpack.c.b16 %v595, %v591
    %v820 = vpack.c.b16 %v596, %v592
    %v821 = vpack.c.b16 %v597, %v593
    %v822 = vpack.c.b16 %v598, %v594
    %v823 = vpack.c.b16 %v603, %v599
    %v824 = vpack.c.b16 %v604, %v600
    %v825 = vpack.c.b16 %v605, %v601
    %v826 = vpack.c.b16 %v606, %v602
    %v827 = vpack.c.b16 %v611, %v607
    %v828 = vpack.c.b16 %v612, %v608
    %v829 = vpack.c.b16 %v613, %v609
    %v830 = vpack.c.b16 %v614, %v610
    %v831 = vpack.c.b16 %v619, %v615
    %v832 = vpack.c.b16 %v620, %v616
    %v833 = vpack.c.b16 %v621, %v617
    %v834 = vpack.c.b16 %v622, %v618
    %v835 = vpack.c.b16 %v627, %v623
    %v836 = vpack.c.b16 %v628, %v624
    %v837 = vpack.c.b16 %v629, %v625
    %v838 = vpack.c.b16 %v630, %v626
    %v839 = vpack.c.b16 %v635, %v631
    %v840 = vpack.c.b16 %v636, %v632
    %v841 = vpack.c.b16 %v637, %v633
    %v842 = vpack.c.b16 %v638, %v634
    %v843 = vpack.c.b16 %v643, %v639
    %v844 = vpack.c.b16 %v644, %v640
    %v845 = vpack.c.b16 %v645, %v641
    %v846 = vpack.c.b16 %v646, %v642
    %v847 = vpack.c.b16 %v651, %v647
    %v848 = vpack.c.b16 %v652, %v648
    %v849 = vpack.c.b16 %v653, %v649
    %v850 = vpack.c.b16 %v654, %v650
    %v851 = vpack.c.b16 %v659, %v655
    %v852 = vpack.c.b16 %v660, %v656
    %v853 = vpack.c.b16 %v661, %v657
    %v854 = vpack.c.b16 %v662, %v658
    %v855 = vpack.c.b16 %v667, %v663
    %v856 = vpack.c.b16 %v668, %v664
    %v857 = vpack.c.b16 %v669, %v665
    %v858 = vpack.c.b16 %v670, %v666
    %v859 = vpack.c.b16 %v675, %v671
    %v860 = vpack.c.b16 %v676, %v672
    %v861 = vpack.c.b16 %v677, %v673
    %v862 = vpack.c.b16 %v678, %v674
    %v863 = vpack.c.b16 %v683, %v679
    %v864 = vpack.c.b16 %v684, %v680
    %v865 = vpack.c.b16 %v685, %v681
    %v866 = vpack.c.b16 %v686, %v682
    %v867 = vpack.c.b16 %v691, %v687
    %v868 = vpack.c.b16 %v692, %v688
    %v869 = vpack.c.b16 %v693, %v689
    %v870 = vpack.c.b16 %v694, %v690
    %v871 = vpack.c.b16 %v699, %v695
    %v872 = vpack.c.b16 %v700, %v696
    %v873 = vpack.c.b16 %v701, %v697
    %v874 = vpack.c.b16 %v702, %v698
    %v875 = vpack.c.b16 %v707, %v703
    %v876 = vpack.c.b16 %v708, %v704
    %v877 = vpack.c.b16 %v709, %v705
    %v878 = vpack.c.b16 %v710, %v706
    %v879 = vpack.c.b16 %v715, %v711
    %v880 = vpack.c.b16 %v716, %v712
    %v881 = vpack.c.b16 %v717, %v713
    %v882 = vpack.c.b16 %v718, %v714
    %v883 = vpack.c.b16 %v723, %v719
    %v884 = vpack.c.b16 %v724, %v720
    %v885 = vpack.c.b16 %v725, %v721
    %v886 = vpack.c.b16 %v726, %v722
    %v887 = vpack.c.b16 %v731, %v727
    %v888 = vpack.c.b16 %v732, %v728
    %v889 = vpack.c.b16 %v733, %v729
    %v890 = vpack.c.b16 %v734, %v730
    %v891 = vpack.c.b16 %v739, %v735
    %v892 = vpack.c.b16 %v740, %v736
    %v893 = vpack.c.b16 %v741, %v737
    %v894 = vpack.c.b16 %v742, %v738
    %v895 = vpack.c.b16 %v747, %v743
    %v896 = vpack.c.b16 %v748, %v744
    %v897 = vpack.c.b16 %v749, %v745
    %v898 = vpack.c.b16 %v750, %v746
    %v899 = vpack.c.b16 %v755, %v751
    %v900 = vpack.c.b16 %v756, %v752
    %v901 = vpack.c.b16 %v757, %v753
    %v902 = vpack.c.b16 %v758, %v754
    %v903 = vpack.c.b16 %v763, %v759
    %v904 = vpack.c.b16 %v764, %v760
    %v905 = vpack.c.b16 %v765, %v761
    %v906 = vpack.c.b16 %v766, %v762
    %v907 = vpack.c.b16 %v771, %v767
    %v908 = vpack.c.b16 %v772, %v768
    %v909 = vpack.c.b16 %v773, %v769
    %v910 = vpack.c.b16 %v774, %v770
    %v911 = vpack.c.b16 %v779, %v775
    %v912 = vpack.c.b16 %v780, %v776
    %v913 = vpack.c.b16 %v781, %v777
    %v914 = vpack.c.b16 %v782, %v778
    %v915 = vpack.c.b16 %v787, %v783
    %v916 = vpack.c.b16 %v788, %v784
    %v917 = vpack.c.b16 %v789, %v785
    %v918 = vpack.c.b16 %v790, %v786
    %1047 = vmatpush.bf16.msra.mxu0 %v819
    %1048 = vmatpush.bf16.msra.mxu0 %v815
    %1049 = vmatpush.bf16.msra.mxu0 %v811
    %1050 = vmatpush.bf16.msra.mxu0 %v807
    %1051 = vmatpush.bf16.msra.mxu0 %v803
    %1052 = vmatpush.bf16.msra.mxu0 %v799
    %1053 = vmatpush.bf16.msra.mxu0 %v795
    %1054 = vmatpush.bf16.msra.mxu0 %v791
    %1055 = vmatmul.bf16.gmra.mxu0 %v265
    %v1056 = vpop.f32.mrf.mxu0
    %v1057 = vadd.f32 %v399, %v1056
    %v1058 = vpop.f32.mrf.mxu0
    %1059 = vdwg.mxu0
    %1060 = vmatpush.bf16.msra.mxu0 %v851
    %1061 = vmatpush.bf16.msra.mxu0 %v847
    %1062 = vmatpush.bf16.msra.mxu0 %v843
    %1063 = vmatpush.bf16.msra.mxu0 %v839
    %1064 = vmatpush.bf16.msra.mxu0 %v835
    %1065 = vmatpush.bf16.msra.mxu0 %v831
    %1066 = vmatpush.bf16.msra.mxu0 %v827
    %1067 = vmatpush.bf16.msra.mxu0 %v823
    %1068 = vmatmul.bf16.gmra.mxu0 %v266
    %v1069 = vpop.f32.mrf.mxu0
    %v1070 = vadd.f32 %v1057, %v1069
    %v1071 = vpop.f32.mrf.mxu0
    %1072 = vdwg.mxu0
    %1073 = vmatpush.bf16.msra.mxu0 %v883
    %1074 = vmatpush.bf16.msra.mxu0 %v879
    %1075 = vmatpush.bf16.msra.mxu0 %v875
    %1076 = vmatpush.bf16.msra.mxu0 %v871
    %1077 = vmatpush.bf16.msra.mxu0 %v867
    %1078 = vmatpush.bf16.msra.mxu0 %v863
    %1079 = vmatpush.bf16.msra.mxu0 %v859
    %1080 = vmatpush.bf16.msra.mxu0 %v855
    %1081 = vmatmul.bf16.gmra.mxu0 %v267
    %v1082 = vpop.f32.mrf.mxu0
    %v1083 = vadd.f32 %v1070, %v1082
    %v1084 = vpop.f32.mrf.mxu0
    %1085 = vdwg.mxu0
    %1086 = vmatpush.bf16.msra.mxu0 %v915
    %1087 = vmatpush.bf16.msra.mxu0 %v911
    %1088 = vmatpush.bf16.msra.mxu0 %v907
    %1089 = vmatpush.bf16.msra.mxu0 %v903
    %1090 = vmatpush.bf16.msra.mxu0 %v899
    %1091 = vmatpush.bf16.msra.mxu0 %v895
    %1092 = vmatpush.bf16.msra.mxu0 %v891
    %1093 = vmatpush.bf16.msra.mxu0 %v887
    %1094 = vmatmul.bf16.gmra.mxu0 %v268
    %v1095 = vpop.f32.mrf.mxu0
    %v1096 = vadd.f32 %v1083, %v1095
    %v1097 = vpop.f32.mrf.mxu0
    %1098 = vdwg.mxu0
    %1099 = vmatpush.bf16.msra.mxu0 %v820
    %1100 = vmatpush.bf16.msra.mxu0 %v816
    %1101 = vmatpush.bf16.msra.mxu0 %v812
    %1102 = vmatpush.bf16.msra.mxu0 %v808
    %1103 = vmatpush.bf16.msra.mxu0 %v804
    %1104 = vmatpush.bf16.msra.mxu0 %v800
    %1105 = vmatpush.bf16.msra.mxu0 %v796
    %1106 = vmatpush.bf16.msra.mxu0 %v792
    %1107 = vmatmul.bf16.gmra.mxu0 %v265
    %v1108 = vpop.f32.mrf.mxu0
    %v1109 = vadd.f32 %v400, %v1108
    %v1110 = vpop.f32.mrf.mxu0
    %1111 = vdwg.mxu0
    %1112 = vmatpush.bf16.msra.mxu0 %v852
    %1113 = vmatpush.bf16.msra.mxu0 %v848
    %1114 = vmatpush.bf16.msra.mxu0 %v844
    %1115 = vmatpush.bf16.msra.mxu0 %v840
    %1116 = vmatpush.bf16.msra.mxu0 %v836
    %1117 = vmatpush.bf16.msra.mxu0 %v832
    %1118 = vmatpush.bf16.msra.mxu0 %v828
    %1119 = vmatpush.bf16.msra.mxu0 %v824
    %1120 = vmatmul.bf16.gmra.mxu0 %v266
    %v1121 = vpop.f32.mrf.mxu0
    %v1122 = vadd.f32 %v1109, %v1121
    %v1123 = vpop.f32.mrf.mxu0
    %1124 = vdwg.mxu0
    %1125 = vmatpush.bf16.msra.mxu0 %v884
    %1126 = vmatpush.bf16.msra.mxu0 %v880
    %1127 = vmatpush.bf16.msra.mxu0 %v876
    %1128 = vmatpush.bf16.msra.mxu0 %v872
    %1129 = vmatpush.bf16.msra.mxu0 %v868
    %1130 = vmatpush.bf16.msra.mxu0 %v864
    %1131 = vmatpush.bf16.msra.mxu0 %v860
    %1132 = vmatpush.bf16.msra.mxu0 %v856
    %1133 = vmatmul.bf16.gmra.mxu0 %v267
    %v1134 = vpop.f32.mrf.mxu0
    %v1135 = vadd.f32 %v1122, %v1134
    %v1136 = vpop.f32.mrf.mxu0
    %1137 = vdwg.mxu0
    %1138 = vmatpush.bf16.msra.mxu0 %v916
    %1139 = vmatpush.bf16.msra.mxu0 %v912
    %1140 = vmatpush.bf16.msra.mxu0 %v908
    %1141 = vmatpush.bf16.msra.mxu0 %v904
    %1142 = vmatpush.bf16.msra.mxu0 %v900
    %1143 = vmatpush.bf16.msra.mxu0 %v896
    %1144 = vmatpush.bf16.msra.mxu0 %v892
    %1145 = vmatpush.bf16.msra.mxu0 %v888
    %1146 = vmatmul.bf16.gmra.mxu0 %v268
    %v1147 = vpop.f32.mrf.mxu0
    %v1148 = vadd.f32 %v1135, %v1147
    %v1149 = vpop.f32.mrf.mxu0
    %1150 = vdwg.mxu0
    %1151 = vmatpush.bf16.msra.mxu0 %v821
    %1152 = vmatpush.bf16.msra.mxu0 %v817
    %1153 = vmatpush.bf16.msra.mxu0 %v813
    %1154 = vmatpush.bf16.msra.mxu0 %v809
    %1155 = vmatpush.bf16.msra.mxu0 %v805
    %1156 = vmatpush.bf16.msra.mxu0 %v801
    %1157 = vmatpush.bf16.msra.mxu0 %v797
    %1158 = vmatpush.bf16.msra.mxu0 %v793
    %1159 = vmatmul.bf16.gmra.mxu0 %v265
    %v1160 = vpop.f32.mrf.mxu0
    %v1161 = vadd.f32 %v401, %v1160
    %v1162 = vpop.f32.mrf.mxu0
    %1163 = vdwg.mxu0
    %1164 = vmatpush.bf16.msra.mxu0 %v853
    %1165 = vmatpush.bf16.msra.mxu0 %v849
    %1166 = vmatpush.bf16.msra.mxu0 %v845
    %1167 = vmatpush.bf16.msra.mxu0 %v841
    %1168 = vmatpush.bf16.msra.mxu0 %v837
    %1169 = vmatpush.bf16.msra.mxu0 %v833
    %1170 = vmatpush.bf16.msra.mxu0 %v829
    %1171 = vmatpush.bf16.msra.mxu0 %v825
    %1172 = vmatmul.bf16.gmra.mxu0 %v266
    %v1173 = vpop.f32.mrf.mxu0
    %v1174 = vadd.f32 %v1161, %v1173
    %v1175 = vpop.f32.mrf.mxu0
    %1176 = vdwg.mxu0
    %1177 = vmatpush.bf16.msra.mxu0 %v885
    %1178 = vmatpush.bf16.msra.mxu0 %v881
    %1179 = vmatpush.bf16.msra.mxu0 %v877
    %1180 = vmatpush.bf16.msra.mxu0 %v873
    %1181 = vmatpush.bf16.msra.mxu0 %v869
    %1182 = vmatpush.bf16.msra.mxu0 %v865
    %1183 = vmatpush.bf16.msra.mxu0 %v861
    %1184 = vmatpush.bf16.msra.mxu0 %v857
    %1185 = vmatmul.bf16.gmra.mxu0 %v267
    %v1186 = vpop.f32.mrf.mxu0
    %v1187 = vadd.f32 %v1174, %v1186
    %v1188 = vpop.f32.mrf.mxu0
    %1189 = vdwg.mxu0
    %1190 = vmatpush.bf16.msra.mxu0 %v917
    %1191 = vmatpush.bf16.msra.mxu0 %v913
    %1192 = vmatpush.bf16.msra.mxu0 %v909
    %1193 = vmatpush.bf16.msra.mxu0 %v905
    %1194 = vmatpush.bf16.msra.mxu0 %v901
    %1195 = vmatpush.bf16.msra.mxu0 %v897
    %1196 = vmatpush.bf16.msra.mxu0 %v893
    %1197 = vmatpush.bf16.msra.mxu0 %v889
    %1198 = vmatmul.bf16.gmra.mxu0 %v268
    %v1199 = vpop.f32.mrf.mxu0
    %v1200 = vadd.f32 %v1187, %v1199
    %v1201 = vpop.f32.mrf.mxu0
    %1202 = vdwg.mxu0
    %1203 = vmatpush.bf16.msra.mxu0 %v822
    %1204 = vmatpush.bf16.msra.mxu0 %v818
    %1205 = vmatpush.bf16.msra.mxu0 %v814
    %1206 = vmatpush.bf16.msra.mxu0 %v810
    %1207 = vmatpush.bf16.msra.mxu0 %v806
    %1208 = vmatpush.bf16.msra.mxu0 %v802
    %1209 = vmatpush.bf16.msra.mxu0 %v798
    %1210 = vmatpush.bf16.msra.mxu0 %v794
    %1211 = vmatmul.bf16.gmra.mxu0 %v265
    %v1212 = vpop.f32.mrf.mxu0
    %v1213 = vadd.f32 %v402, %v1212
    %v1214 = vpop.f32.mrf.mxu0
    %1215 = vdwg.mxu0
    %1216 = vmatpush.bf16.msra.mxu0 %v854
    %1217 = vmatpush.bf16.msra.mxu0 %v850
    %1218 = vmatpush.bf16.msra.mxu0 %v846
    %1219 = vmatpush.bf16.msra.mxu0 %v842
    %1220 = vmatpush.bf16.msra.mxu0 %v838
    %1221 = vmatpush.bf16.msra.mxu0 %v834
    %1222 = vmatpush.bf16.msra.mxu0 %v830
    %1223 = vmatpush.bf16.msra.mxu0 %v826
    %1224 = vmatmul.bf16.gmra.mxu0 %v266
    %v1225 = vpop.f32.mrf.mxu0
    %v1226 = vadd.f32 %v1213, %v1225
    %v1227 = vpop.f32.mrf.mxu0
    %1228 = vdwg.mxu0
    %1229 = vmatpush.bf16.msra.mxu0 %v886
    %1230 = vmatpush.bf16.msra.mxu0 %v882
    %1231 = vmatpush.bf16.msra.mxu0 %v878
    %1232 = vmatpush.bf16.msra.mxu0 %v874
    %1233 = vmatpush.bf16.msra.mxu0 %v870
    %1234 = vmatpush.bf16.msra.mxu0 %v866
    %1235 = vmatpush.bf16.msra.mxu0 %v862
    %1236 = vmatpush.bf16.msra.mxu0 %v858
    %1237 = vmatmul.bf16.gmra.mxu0 %v267
    %v1238 = vpop.f32.mrf.mxu0
    %v1239 = vadd.f32 %v1226, %v1238
    %v1240 = vpop.f32.mrf.mxu0
    %1241 = vdwg.mxu0
    %1242 = vmatpush.bf16.msra.mxu0 %v918
    %1243 = vmatpush.bf16.msra.mxu0 %v914
    %1244 = vmatpush.bf16.msra.mxu0 %v910
    %1245 = vmatpush.bf16.msra.mxu0 %v906
    %1246 = vmatpush.bf16.msra.mxu0 %v902
    %1247 = vmatpush.bf16.msra.mxu0 %v898
    %1248 = vmatpush.bf16.msra.mxu0 %v894
    %1249 = vmatpush.bf16.msra.mxu0 %v890
    %1250 = vmatmul.bf16.gmra.mxu0 %v268
    %v1251 = vpop.f32.mrf.mxu0
    %v1252 = vadd.f32 %v1239, %v1251
    %v1253 = vpop.f32.mrf.mxu0
    %1254 = vdwg.mxu0
    %1255 = vst [vmem:[%s8] sm:$0xff] %v258
    %1256 = vst [vmem:[%s8 + $0x8] sm:$0xff] %v1096
    %1257 = vst [vmem:[%s8 + $0x10] sm:$0xff] %v1148
    %1258 = vst [vmem:[%s8 + $0x18] sm:$0xff] %v1200
    %1259 = vst [vmem:[%s8 + $0x20] sm:$0xff] %v1252
    // Predicated region
    $region54: #{_fused_forward.1} parent=1 // pred_check
      _
    $region55: #{_fused_forward.1} parent=1 // pred_check_branch
      %1261 = sbr.rel (0) target = $region57
    $region56: #{_fused_forward.1} parent=1 // pred_region
      _
    $region57: #{_fused_forward.1} parent=1 // pred_fallthru
      _
    // Predicated region
    $region58: #{_fused_forward.1} parent=1 // pred_check
      _
    $region59: #{_fused_forward.1} parent=1 // pred_check_branch
      %1263 = sbr.rel (0) target = $region61
    $region60: #{_fused_forward.1} parent=1 // pred_region
      _
    $region61: #{_fused_forward.1} parent=1 // pred_fallthru
      _
    %1264 = vsyncpa [#allocation3], 1
    %1265 = vsyncpa [#allocation5], 1
    %1266 = vsyncpa [#allocation8], 1

</llo_original>
